<compile_context>
chip_gen: v7x
topology: tpu7x:2x2x1
jax: 0.10.0
libtpu: 0.0.40
codegen_flags: <defaults>
</compile_context>

<pallas_src>
import functools
import math

import jax
import jax.numpy as jnp
from jax.experimental import pallas as pl
from jax.experimental.pallas import tpu as pltpu


def _bce_kernel(x_ref, t_ref, o_ref, acc_ref, *, t_scale, t_offset):
    """Stable BCE-with-logits, elementwise VPU accumulation over row tiles.

    per-element loss(x, t) = max(x, 0) - x*t + log1p(exp(-|x|))
    (identical to torch.nn.BCEWithLogitsLoss with pos_weight=None)
    """
    i = pl.program_id(1)

    @pl.when(i == 0)
    def _():
        acc_ref[...] = jnp.zeros_like(acc_ref)

    x = x_ref[...].astype(jnp.float32)
    t = t_ref[...].astype(jnp.float32)

    if t_scale != 1.0 or t_offset != 0.0:
        # folded label smoothing: t*pos + (1-t)*neg == t*(pos-neg) + neg
        t = t * t_scale + t_offset

    loss = jnp.maximum(x, 0.0) - x * t + jnp.log1p(jnp.exp(-jnp.abs(x)))

    # Pure-VPU elementwise accumulation (no per-step cross-lane reduce).
    acc_ref[...] += loss

    @pl.when(i == pl.num_programs(1) - 1)
    def _():
        # Single cross-lane + cross-sublane reduction per core partition.
        o_ref[...] = jnp.sum(acc_ref[...]).reshape(1, 1)


def _best_2d_shape(shape):
    """Flatten an arbitrary shape to a lane-dense (rows, cols) slab."""
    n_elems = math.prod(shape)
    for cols in (4096, 2048, 1024, 512, 256, 128):
        if n_elems % cols == 0 and (n_elems // cols) % 8 == 0:
            return n_elems // cols, cols
    if len(shape) >= 2:
        return n_elems // shape[-1], shape[-1]
    return 1, n_elems


def _choose_tiling(n_rows, n_cols, itemsize, target_block_bytes):
    """Pick (num_parts, tile_rows, steps_per_part) with dtype-aware alignment."""
    if n_rows % 8 != 0:
        # Ragged row count: single full-array block (fine for the small shapes
        # this fallback is meant for).
        # TODO(synk): masked / padded multi-block path for large ragged inputs.
        return 1, n_rows, 1

    # Split rows across (up to) 2 TensorCores when evenly possible.
    num_parts = 2 if n_rows % 16 == 0 else 1
    rows_per_part = n_rows // num_parts  # multiple of 8

    # Row granularity matched to native sublane packing of the input dtype
    # (avoids packed-tile relayouts for bf16 / int8 inputs).
    gran = 8
    if itemsize == 2 and rows_per_part % 16 == 0:
        gran = 16
    elif itemsize == 1 and rows_per_part % 32 == 0:
        gran = 32

    # Target ~target_block_bytes per input block, rounded down to granularity.
    max_rows = max(gran,
                   (target_block_bytes // (itemsize * n_cols)) // gran * gran)
    tile_rows = min(max_rows, rows_per_part)
    tile_rows = max(gran, (tile_rows // gran) * gran)
    while rows_per_part % tile_rows != 0:
        tile_rows -= gran
    return num_parts, tile_rows, rows_per_part // tile_rows


def bce_with_logits_loss(logits, targets, *, label_smoothing=0.0,
                         target_block_bytes=4 * 1024 * 1024):
    """Scalar mean BCE-with-logits loss (matches the PyTorch module forward)."""
    assert logits.shape == targets.shape
    n_elems = math.prod(logits.shape)
    N, C = _best_2d_shape(logits.shape)

    logits2 = jnp.reshape(logits, (N, C))
    targets2 = jnp.reshape(targets, (N, C))

    itemsize = max(jnp.dtype(logits.dtype).itemsize,
                   jnp.dtype(targets.dtype).itemsize)
    num_parts, tile_rows, steps = _choose_tiling(N, C, itemsize,
                                                 target_block_bytes)

    block_bytes = tile_rows * C * itemsize
    acc_bytes = tile_rows * C * 4
    # 2 inputs x 2 pipeline buffers + f32 accumulator + slack, capped for v7x.
    needed = 2 * 2 * block_bytes + acc_bytes + (4 << 20)
    assert needed <= (48 << 20), (
        "chosen tiling does not fit in VMEM; lower target_block_bytes")
    vmem_limit = int(min(48 << 20, max(32 << 20, needed)))

    ls = float(label_smoothing)
    kernel = functools.partial(
        _bce_kernel,
        t_scale=1.0 - 2.0 * ls,   # pos - neg
        t_offset=ls,              # neg
    )

    partials = pl.pallas_call(
        kernel,
        out_shape=jax.ShapeDtypeStruct((num_parts, 1), jnp.float32),
        grid_spec=pltpu.PrefetchScalarGridSpec(
            num_scalar_prefetch=0,
            grid=(num_parts, steps),
            in_specs=[
                pl.BlockSpec((tile_rows, C), lambda c, i: (c * steps + i, 0)),
                pl.BlockSpec((tile_rows, C), lambda c, i: (c * steps + i, 0)),
            ],
            out_specs=pl.BlockSpec((1, 1), lambda c, i: (c, 0)),
            scratch_shapes=[pltpu.VMEM((tile_rows, C), jnp.float32)],
        ),
        compiler_params=pltpu.CompilerParams(
            dimension_semantics=("parallel", "arbitrary"),
            vmem_limit_bytes=vmem_limit,
        ),
    )(logits2, targets2)

    # reduction='mean' over all elements; per-core partials summed here.
    return jnp.sum(partials) / float(n_elems)


def _reference(logits, targets, label_smoothing):
    x = logits.astype(jnp.float32)
    t = targets.astype(jnp.float32)
    if label_smoothing > 0.0:
        t = t * (1.0 - label_smoothing) + (1.0 - t) * label_smoothing
    loss = jnp.maximum(x, 0.0) - x * t + jnp.log1p(jnp.exp(-jnp.abs(x)))
    return jnp.mean(loss)


if __name__ == "__main__":
    key = jax.random.PRNGKey(0)
    k1, k2, k3, k4, k5, k6 = jax.random.split(key, 6)

    # 1) Small (N, C) shape, label smoothing on, 2-way "parallel" split.
    N, C = 16, 256
    logits = jax.random.normal(k1, (N, C), dtype=jnp.float32)
    targets = jax.random.bernoulli(k2, 0.5, (N, C)).astype(jnp.float32)
    loss = bce_with_logits_loss(logits, targets, label_smoothing=0.1)
    loss = jax.block_until_ready(loss)
    ref = _reference(logits, targets, 0.1)
    assert jnp.allclose(loss, ref, rtol=1e-5, atol=1e-5), (loss, ref)

    # 2) Multi-step accumulation path (small blocks forced), bf16 inputs,
    #    no smoothing (kernel upcasts internally; 16-row bf16 granularity).
    N2, C2 = 128, 256
    logits2 = jax.random.normal(k3, (N2, C2), dtype=jnp.float32).astype(jnp.bfloat16)
    targets2 = jax.random.bernoulli(k4, 0.5, (N2, C2)).astype(jnp.bfloat16)
    loss2 = bce_with_logits_loss(logits2, targets2, label_smoothing=0.0,
                                 target_block_bytes=8 * 1024)
    loss2 = jax.block_until_ready(loss2)
    ref2 = _reference(logits2, targets2, 0.0)
    assert jnp.allclose(loss2, ref2, rtol=2e-2, atol=2e-2), (loss2, ref2)

    # 3) 4-D input (e.g. segmentation logits), exercises wrapper flattening.
    shape3 = (2, 4, 16, 16)
    logits3 = jax.random.normal(k5, shape3, dtype=jnp.float32)
    targets3 = jax.random.bernoulli(k6, 0.5, shape3).astype(jnp.float32)
    loss3 = bce_with_logits_loss(logits3, targets3, label_smoothing=0.05)
    loss3 = jax.block_until_ready(loss3)
    ref3 = _reference(logits3, targets3, 0.05)
    assert jnp.allclose(loss3, ref3, rtol=1e-5, atol=1e-5), (loss3, ref3)

    print("KERNEL_OK")
</pallas_src>

<mosaic_0001>
module attributes {stable_mosaic.version = 11 : i64} {
  func.func @_bce_kernel(%arg0: i32, %arg1: i32, %arg2: memref<8x512xf32, #tpu.memory_space<vmem>>, %arg3: memref<8x512xf32, #tpu.memory_space<vmem>>, %arg4: memref<1x1xf32, #tpu.memory_space<vmem>>, %arg5: memref<8x512xf32, #tpu.memory_space<vmem>>) attributes {dimension_semantics = [#tpu.dimension_semantics<parallel>, #tpu.dimension_semantics<arbitrary>], iteration_bounds = array<i64: 1, 1>, scalar_prefetch = 0 : i64, scratch_operands = 1 : i64, tpu.core_type = #tpu.core_type<tc>, window_params = [{transform_indices = @transform_0, window_bounds = array<i64: 8, 512>}, {transform_indices = @transform_1, window_bounds = array<i64: 8, 512>}, {transform_indices = @transform_2, window_bounds = array<i64: 1, 1>}]} {
    %c0_i32 = arith.constant 0 : i32
    %0 = arith.cmpi eq, %arg1, %c0_i32 : i32
    %1 = arith.extui %0 : i1 to i32
    %c0_i32_0 = arith.constant 0 : i32
    %2 = arith.cmpi ne, %1, %c0_i32_0 : i32
    scf.if %2 {
      %cst_13 = arith.constant 0.000000e+00 : f32
      %25 = vector.broadcast %cst_13 : f32 to vector<8x512xf32>
      %c0_14 = arith.constant 0 : index
      %c0_15 = arith.constant 0 : index
      %26 = vector.load %arg5[%c0_14, %c0_15] : memref<8x512xf32, #tpu.memory_space<vmem>>, vector<8x512xf32>
      tpu.vector_store %arg5[%c0_14, %c0_15], %25 {strides = array<i32>} : memref<8x512xf32, #tpu.memory_space<vmem>>, vector<8x512xf32>,
    } else {
    }
    %c0 = arith.constant 0 : index
    %c0_1 = arith.constant 0 : index
    %3 = vector.load %arg2[%c0, %c0_1] : memref<8x512xf32, #tpu.memory_space<vmem>>, vector<8x512xf32>
    %c0_2 = arith.constant 0 : index
    %c0_3 = arith.constant 0 : index
    %4 = vector.load %arg3[%c0_2, %c0_3] : memref<8x512xf32, #tpu.memory_space<vmem>>, vector<8x512xf32>
    %cst = arith.constant 8.000000e-01 : f32
    %5 = vector.broadcast %cst : f32 to vector<8x512xf32>
    %6 = arith.mulf %4, %5 : vector<8x512xf32>
    %cst_4 = arith.constant 1.000000e-01 : f32
    %7 = vector.broadcast %cst_4 : f32 to vector<8x512xf32>
    %8 = arith.addf %6, %7 : vector<8x512xf32>
    %cst_5 = arith.constant 0.000000e+00 : f32
    %9 = vector.broadcast %cst_5 : f32 to vector<8x512xf32>
    %10 = arith.maximumf %3, %9 : vector<8x512xf32>
    %11 = arith.mulf %3, %8 : vector<8x512xf32>
    %12 = arith.subf %10, %11 : vector<8x512xf32>
    %13 = math.absf %3 : vector<8x512xf32>
    %cst_6 = arith.constant 0.000000e+00 : f32
    %14 = vector.broadcast %cst_6 : f32 to vector<8x512xf32>
    %15 = arith.subf %14, %13 : vector<8x512xf32>
    %16 = math.exp %15 : vector<8x512xf32>
    %17 = math.log1p %16 : vector<8x512xf32>
    %18 = arith.addf %12, %17 : vector<8x512xf32>
    %c0_7 = arith.constant 0 : index
    %c0_8 = arith.constant 0 : index
    %19 = vector.load %arg5[%c0_7, %c0_8] : memref<8x512xf32, #tpu.memory_space<vmem>>, vector<8x512xf32>
    %20 = arith.addf %19, %18 : vector<8x512xf32>
    %c0_9 = arith.constant 0 : index
    %c0_10 = arith.constant 0 : index
    %21 = vector.load %arg5[%c0_9, %c0_10] : memref<8x512xf32, #tpu.memory_space<vmem>>, vector<8x512xf32>
    tpu.vector_store %arg5[%c0_9, %c0_10], %20 {strides = array<i32>} : memref<8x512xf32, #tpu.memory_space<vmem>>, vector<8x512xf32>,
    %c0_i32_11 = arith.constant 0 : i32
    %22 = arith.cmpi eq, %arg1, %c0_i32_11 : i32
    %23 = arith.extui %22 : i1 to i32
    %c0_i32_12 = arith.constant 0 : i32
    %24 = arith.cmpi ne, %23, %c0_i32_12 : i32
    scf.if %24 {
      %c0_13 = arith.constant 0 : index
      %c0_14 = arith.constant 0 : index
      %25 = vector.load %arg5[%c0_13, %c0_14] : memref<8x512xf32, #tpu.memory_space<vmem>>, vector<8x512xf32>
      %26 = vector.shape_cast %25 : vector<8x512xf32> to vector<1x8x512xf32>
      %cst_15 = arith.constant dense<0.000000e+00> : vector<1xf32>
      %27 = vector.multi_reduction <add>, %26, %cst_15 [1, 2] : vector<1x8x512xf32> to vector<1xf32>
      %28 = vector.shape_cast %27 : vector<1xf32> to vector<1x1x1xf32>
      %29 = vector.extract %28[0, 0, 0] : f32 from vector<1x1x1xf32>
      %30 = vector.broadcast %29 : f32 to vector<1x1xf32>
      %c0_16 = arith.constant 0 : index
      %c0_17 = arith.constant 0 : index
      %31 = vector.load %arg4[%c0_16, %c0_17] : memref<1x1xf32, #tpu.memory_space<vmem>>, vector<1x1xf32>
      tpu.vector_store %arg4[%c0_16, %c0_17], %30 {strides = array<i32>} : memref<1x1xf32, #tpu.memory_space<vmem>>, vector<1x1xf32>,
    } else {
    }
    return
  }
  func.func @transform_0(%arg0: i32, %arg1: i32) -> (i32, i32) {
    %c1_i32 = arith.constant 1 : i32
    %0 = arith.muli %arg0, %c1_i32 : i32
    %1 = arith.addi %0, %arg1 : i32
    %c0_i32 = arith.constant 0 : i32
    %c0_i32_0 = arith.constant 0 : i32
    return %1, %c0_i32 : i32, i32
  }
  func.func @transform_1(%arg0: i32, %arg1: i32) -> (i32, i32) {
    %c1_i32 = arith.constant 1 : i32
    %0 = arith.muli %arg0, %c1_i32 : i32
    %1 = arith.addi %0, %arg1 : i32
    %c0_i32 = arith.constant 0 : i32
    %c0_i32_0 = arith.constant 0 : i32
    return %1, %c0_i32 : i32, i32
  }
  func.func @transform_2(%arg0: i32, %arg1: i32) -> (i32, i32) {
    %c0_i32 = arith.constant 0 : i32
    %c0_i32_0 = arith.constant 0 : i32
    return %arg0, %c0_i32 : i32, i32
  }
}

</mosaic_0001>

<llo_original>
// kernel: tpu_custom_call.1
$region0: #{tpu_custom_call.1}
  #allocation0 [shape = 'u32[]', space=smem, size = 0x4, offset = 0x4, fixed_abs, tag = 'smem constant byte address 0x4 - core index']
  #allocation1 [shape = 'u32[144,128]{1,0:T(1,128)}', space=vmem, size = 0x12000, scoped, tag = 'internal scratch']
  #allocation2 [shape = 'f32[8,512]{1,0:T(8,128)}', space=vmem, size = 0x4000, scoped, tag = 'scratch operand']
  %s0 = inlined_call_operand.hbm [shape: f32[8,512], index: 0, kind: input, shape index: {}]
  %s1 = inlined_call_operand.hbm [shape: f32[8,512], index: 1, kind: input, shape index: {}]
  %s2 = inlined_call_operand.hbm [shape: f32[1,1], index: 2, kind: output, shape index: {}]
  %s3 = sld [smem:[#allocation0]]
  $region34: #{tpu_custom_call.1} parent=0
    _
  %s5 = ssub.s32 1, %s3
  %s6 = scalar_select 0, %s5, %s3
  $region1: #{tpu_custom_call.1} parent=0
    #allocation3 [shape = 'u8[16384]{0}', space=vmem, size = 0x4000, scoped, tag = 'input window, operand 0, single buffered']
    #allocation4 [shape = 's32[1]{0}', space=sflag, size = 0x4, scoped, tag = 'scoped memory for tpu_custom_call.1']
    #allocation5 [shape = 's32[1]{0}', space=sflag, size = 0x4, scoped, tag = 'scoped memory for tpu_custom_call.1']
    #allocation6 [shape = 'u8[16384]{0}', space=vmem, size = 0x4000, scoped, tag = 'input window, operand 1, single buffered']
    #allocation7 [shape = 's32[1]{0}', space=sflag, size = 0x4, scoped, tag = 'scoped memory for tpu_custom_call.1']
    #allocation8 [shape = 'u8[512]{0}', space=vmem, size = 0x400, scoped, tag = 'output window, operand 0, single buffered']
    %7 = vsyncpa [#allocation4], 0
    %8 = vsyncpa [#allocation7], 0
    %9 = vsyncpa [#allocation5], 0
    // Predicated region
    $region2: #{tpu_custom_call.1} parent=1 // pred_check
      _
    $region3: #{tpu_custom_call.1} parent=1 // pred_check_branch
      %11 = sbr.rel (0) target = $region5
    $region4: #{tpu_custom_call.1} parent=1 // pred_region
      %s12 = sadd.s32 0, 0
      %s14 = ssub.s32 512, 512
      %15 = vsyncadd [#allocation4], %s14
      %s16 = smul.addr %s12, 4
      %s17 = smul.addr %s16, 128
      %s18 = scalar_lea.hbm %s0, %s17
      %s20 = sshll.u32 [#allocation3], 4
      %s21 = int_to_ptr.vmem [resolvable:$true] %s20
      %23 = dma.hbm_to_vmem [thread:$0]  %s18, 512, %s21, [#allocation4]
    $region5: #{tpu_custom_call.1} parent=1 // pred_fallthru
      _
    // Predicated region
    $region6: #{tpu_custom_call.1} parent=1 // pred_check
      _
    $region7: #{tpu_custom_call.1} parent=1 // pred_check_branch
      %25 = sbr.rel (0) target = $region9
    $region8: #{tpu_custom_call.1} parent=1 // pred_region
      %s26 = sadd.s32 0, 0
      %s28 = ssub.s32 512, 512
      %29 = vsyncadd [#allocation7], %s28
      %s30 = smul.addr %s26, 4
      %s31 = smul.addr %s30, 128
      %s32 = scalar_lea.hbm %s1, %s31
      %s34 = sshll.u32 [#allocation6], 4
      %s35 = int_to_ptr.vmem [resolvable:$true] %s34
      %37 = dma.hbm_to_vmem [thread:$0]  %s32, 512, %s35, [#allocation7]
    $region9: #{tpu_custom_call.1} parent=1 // pred_fallthru
      _
    // Predicated region
    $region10: #{tpu_custom_call.1} parent=1 // pred_check
      _
    $region11: #{tpu_custom_call.1} parent=1 // pred_check_branch
      %39 = sbr.rel (0) target = $region13
    $region12: #{tpu_custom_call.1} parent=1 // pred_region
      %40 = dma.done [#allocation4], 512
    $region13: #{tpu_custom_call.1} parent=1 // pred_fallthru
      _
    // Predicated region
    $region14: #{tpu_custom_call.1} parent=1 // pred_check
      _
    $region15: #{tpu_custom_call.1} parent=1 // pred_check_branch
      %42 = sbr.rel (0) target = $region17
    $region16: #{tpu_custom_call.1} parent=1 // pred_region
      %43 = dma.done [#allocation7], 512
    $region17: #{tpu_custom_call.1} parent=1 // pred_fallthru
      _
    %s44 = sadd.s32 0, 0
    %s45 = sadd.s32 0, 0
    %p46 = scmp.eq.s32.totalorder 0, 0
    // Predicated region
    $region18: #{tpu_custom_call.1} parent=1 // pred_check
      %p47 = pneg %p46
    $region19: #{tpu_custom_call.1} parent=1 // pred_check_branch
      %49 = sbr.rel (%p47) target = $region21
    $region20: #{tpu_custom_call.1} parent=1 // pred_region
      %50 = vst [vmem:[#allocation2] sm:$0xff] 0.0
      %51 = vst [vmem:[#allocation2 + $0x8] sm:$0xff] 0.0
      %52 = vst [vmem:[#allocation2 + $0x10] sm:$0xff] 0.0
      %53 = vst [vmem:[#allocation2 + $0x18] sm:$0xff] 0.0
    $region21: #{tpu_custom_call.1} parent=1 // pred_fallthru
      _
    %v54 = vld [vmem:[#allocation3] sm:$0xff]
    %v55 = vld [vmem:[#allocation3 + $0x8] sm:$0xff]
    %v56 = vld [vmem:[#allocation3 + $0x10] sm:$0xff]
    %v57 = vld [vmem:[#allocation3 + $0x18] sm:$0xff]
    %v58 = vld [vmem:[#allocation6] sm:$0xff]
    %v59 = vld [vmem:[#allocation6 + $0x8] sm:$0xff]
    %v60 = vld [vmem:[#allocation6 + $0x10] sm:$0xff]
    %v61 = vld [vmem:[#allocation6 + $0x18] sm:$0xff]
    %v62 = vmul.f32 %v58, 0.8
    %v63 = vmul.f32 %v59, 0.8
    %v64 = vmul.f32 %v60, 0.8
    %v65 = vmul.f32 %v61, 0.8
    %v66 = vadd.f32 %v62, 0.1
    %v67 = vadd.f32 %v63, 0.1
    %v68 = vadd.f32 %v64, 0.1
    %v69 = vadd.f32 %v65, 0.1
    %v70 = vmax.f32 %v54, 0.0
    %v71 = vmax.f32 %v55, 0.0
    %v72 = vmax.f32 %v56, 0.0
    %v73 = vmax.f32 %v57, 0.0
    %v74 = vmul.f32 %v54, %v66
    %v75 = vmul.f32 %v55, %v67
    %v76 = vmul.f32 %v56, %v68
    %v77 = vmul.f32 %v57, %v69
    %v78 = vsub.f32 %v70, %v74
    %v79 = vsub.f32 %v71, %v75
    %v80 = vsub.f32 %v72, %v76
    %v81 = vsub.f32 %v73, %v77
    %v82 = vand.u32 2147483647, %v54
    %v83 = vand.u32 2147483647, %v55
    %v84 = vand.u32 2147483647, %v56
    %v85 = vand.u32 2147483647, %v57
    %v86 = vsub.f32 0.0, %v82
    %v87 = vsub.f32 0.0, %v83
    %v88 = vsub.f32 0.0, %v84
    %v89 = vsub.f32 0.0, %v85
    %v90 = vmul.f32 %v86, 1.442695
    %v91 = vpow.pop %v90
    %v92 = vmul.f32 %v87, 1.442695
    %v93 = vpow.pop %v92
    %v94 = vmul.f32 %v88, 1.442695
    %v95 = vpow.pop %v94
    %v96 = vmul.f32 %v89, 1.442695
    %v97 = vpow.pop %v96
    %v98 = vadd.f32 %v91, 1.0
    %v99 = vlog2.pop %v98
    %v100 = vmul.f32 %v99, 0.6931472
    %v101 = vmul.f32 -0.5, %v91
    %v102 = vadd.f32 %v101, 1.0
    %v103 = vmul.f32 %v102, %v91
    %v104 = vand.u32 2147483647, %v91
    %vm105 = vcmp.lt.f32.partialorder %v104, 0.0004427343
    %v106 = vsel %vm105, %v103, %v100
    %v107 = vadd.f32 %v93, 1.0
    %v108 = vlog2.pop %v107
    %v109 = vmul.f32 %v108, 0.6931472
    %v110 = vmul.f32 -0.5, %v93
    %v111 = vadd.f32 %v110, 1.0
    %v112 = vmul.f32 %v111, %v93
    %v113 = vand.u32 2147483647, %v93
    %vm114 = vcmp.lt.f32.partialorder %v113, 0.0004427343
    %v115 = vsel %vm114, %v112, %v109
    %v116 = vadd.f32 %v95, 1.0
    %v117 = vlog2.pop %v116
    %v118 = vmul.f32 %v117, 0.6931472
    %v119 = vmul.f32 -0.5, %v95
    %v120 = vadd.f32 %v119, 1.0
    %v121 = vmul.f32 %v120, %v95
    %v122 = vand.u32 2147483647, %v95
    %vm123 = vcmp.lt.f32.partialorder %v122, 0.0004427343
    %v124 = vsel %vm123, %v121, %v118
    %v125 = vadd.f32 %v97, 1.0
    %v126 = vlog2.pop %v125
    %v127 = vmul.f32 %v126, 0.6931472
    %v128 = vmul.f32 -0.5, %v97
    %v129 = vadd.f32 %v128, 1.0
    %v130 = vmul.f32 %v129, %v97
    %v131 = vand.u32 2147483647, %v97
    %vm132 = vcmp.lt.f32.partialorder %v131, 0.0004427343
    %v133 = vsel %vm132, %v130, %v127
    %v134 = vadd.f32 %v78, %v106
    %v135 = vadd.f32 %v79, %v115
    %v136 = vadd.f32 %v80, %v124
    %v137 = vadd.f32 %v81, %v133
    %v138 = vld [vmem:[#allocation2] sm:$0xff]
    %v139 = vld [vmem:[#allocation2 + $0x8] sm:$0xff]
    %v140 = vld [vmem:[#allocation2 + $0x10] sm:$0xff]
    %v141 = vld [vmem:[#allocation2 + $0x18] sm:$0xff]
    %v142 = vadd.f32 %v138, %v134
    %v143 = vadd.f32 %v139, %v135
    %v144 = vadd.f32 %v140, %v136
    %v145 = vadd.f32 %v141, %v137
    %146 = vst [vmem:[#allocation2] sm:$0xff] %v142
    %147 = vst [vmem:[#allocation2 + $0x8] sm:$0xff] %v143
    %148 = vst [vmem:[#allocation2 + $0x10] sm:$0xff] %v144
    %149 = vst [vmem:[#allocation2 + $0x18] sm:$0xff] %v145
    // Predicated region
    $region22: #{tpu_custom_call.1} parent=1 // pred_check
      %p150 = pneg %p46
    $region23: #{tpu_custom_call.1} parent=1 // pred_check_branch
      %152 = sbr.rel (%p150) target = $region25
    $region24: #{tpu_custom_call.1} parent=1 // pred_region
      %v153 = vld [vmem:[#allocation2] sm:$0xff]
      %v154 = vld [vmem:[#allocation2 + $0x8] sm:$0xff]
      %v155 = vld [vmem:[#allocation2 + $0x10] sm:$0xff]
      %v156 = vld [vmem:[#allocation2 + $0x18] sm:$0xff]
      %v157 = vadd.f32 %v153, %v154
      %v158 = vadd.f32 %v157, %v155
      %v159 = vadd.f32 %v158, %v156
      %160 = vadd.xlane.f32.xlu0 %v159
      %v161 = vpop.xlane.xlu0 %160
      %v162 = vrot.slane %v161, 4
      %v163 = vadd.f32 %v161, %v162
      %v164 = vrot.slane %v163, 2
      %v165 = vadd.f32 %v163, %v164
      %v166 = vrot.slane %v165, 1
      %v167 = vadd.f32 %v165, %v166
      %s168 = vtos %v167
      %v169 = vstv %s168
      %vm170 = vcmask 0
      %171 = vst.msk [vmem:[#allocation8] sm:$0x1] %vm170, %v169
    $region25: #{tpu_custom_call.1} parent=1 // pred_fallthru
      _
    // Predicated region
    $region26: #{tpu_custom_call.1} parent=1 // pred_check
      _
    $region27: #{tpu_custom_call.1} parent=1 // pred_check_branch
      %173 = sbr.rel (0) target = $region29
    $region28: #{tpu_custom_call.1} parent=1 // pred_region
      %s175 = ssub.s32 16, 16
      %176 = vsyncadd [#allocation5], %s175
      %s178 = sshll.u32 [#allocation8], 4
      %s179 = int_to_ptr.vmem [resolvable:$true] %s178
      %181 = dma.vmem_to_hbm [thread:$0]  %s179, 16, %s2, [#allocation5]
    $region29: #{tpu_custom_call.1} parent=1 // pred_fallthru
      _
    // Predicated region
    $region30: #{tpu_custom_call.1} parent=1 // pred_check
      _
    $region31: #{tpu_custom_call.1} parent=1 // pred_check_branch
      %183 = sbr.rel (0) target = $region33
    $region32: #{tpu_custom_call.1} parent=1 // pred_region
      %184 = dma.done [#allocation5], 16
    $region33: #{tpu_custom_call.1} parent=1 // pred_fallthru
      _
    %185 = vsyncpa [#allocation4], 1
    %186 = vsyncpa [#allocation7], 1
    %187 = vsyncpa [#allocation5], 1

</llo_original>
